<compile_context>
chip_gen: v7x
topology: tpu7x:2x2x1
jax: 0.10.0
libtpu: 0.0.40
codegen_flags: <defaults>
</compile_context>

<pallas_src>
import functools

import jax
import jax.numpy as jnp
from jax.experimental import pallas as pl
from jax.experimental.pallas import tpu as pltpu

_VMEM_LIMIT_BYTES = 48 * 1024 * 1024


def _cparams(*sems):
    return pltpu.CompilerParams(dimension_semantics=tuple(sems),
                                vmem_limit_bytes=_VMEM_LIMIT_BYTES)


def _pick_block(n, target):
    """Largest divisor of n that is <= target (prefer multiples of 8)."""
    if n <= target:
        return n
    for b in range(target, 7, -1):
        if n % b == 0 and b % 8 == 0:
            return b
    for b in range(target, 0, -1):
        if n % b == 0:
            return b
    return n


# ----------------------------------------------------------------------------
# Kernel 1: fused 1x1 conv (matmul) + folded BatchNorm + optional ReLU,
#           tiled over M = N*H*W.
# ----------------------------------------------------------------------------
def _pw_conv_bn_kernel(x_ref, w_ref, scale_ref, shift_ref, o_ref, *, relu):
    y = jnp.dot(x_ref[...], w_ref[...], preferred_element_type=jnp.float32)
    y = y * scale_ref[...] + shift_ref[...]
    if relu:
        y = jnp.maximum(y, 0.0)
    o_ref[...] = y.astype(o_ref.dtype)


def pointwise_conv_bn(x2d, w, scale, shift, *, relu, block_m=256):
    M, Cin = x2d.shape
    Cout = w.shape[1]
    bm = _pick_block(M, block_m)
    return pl.pallas_call(
        functools.partial(_pw_conv_bn_kernel, relu=relu),
        out_shape=jax.ShapeDtypeStruct((M, Cout), x2d.dtype),
        grid=(M // bm,),
        in_specs=[
            pl.BlockSpec((bm, Cin), lambda i: (i, 0)),
            pl.BlockSpec((Cin, Cout), lambda i: (0, 0)),
            pl.BlockSpec((1, Cout), lambda i: (0, 0)),
            pl.BlockSpec((1, Cout), lambda i: (0, 0)),
        ],
        out_specs=pl.BlockSpec((bm, Cout), lambda i: (i, 0)),
        compiler_params=_cparams("parallel"),
    )(x2d, w, scale, shift)


# ----------------------------------------------------------------------------
# Kernel 2: fused 3x3 conv + folded BatchNorm + ReLU, one output row per grid
#           step; the 3-row halo is delivered as three blocked row taps of the
#           padded input (no in-kernel slice+reshape materialisation).
# ----------------------------------------------------------------------------
def _conv3x3_bn_relu_kernel(x0_ref, x1_ref, x2_ref, w_ref, scale_ref, shift_ref,
                            o_ref):
    W = o_ref.shape[2]
    Cout = o_ref.shape[3]
    rows = (x0_ref[0, 0, :, :], x1_ref[0, 0, :, :], x2_ref[0, 0, :, :])
    acc = jnp.zeros((W, Cout), jnp.float32)
    for kh in range(3):
        r = rows[kh]
        for kw in range(3):
            acc = acc + jnp.dot(r[kw:kw + W, :], w_ref[kh, kw, :, :],
                                preferred_element_type=jnp.float32)
    y = acc * scale_ref[...] + shift_ref[...]
    y = jnp.maximum(y, 0.0)
    o_ref[...] = y[None, None, :, :].astype(o_ref.dtype)


def conv3x3_bn_relu(x_padded, w_kkio, scale, shift):
    N, Hp, Wp, Cin = x_padded.shape
    H, W = Hp - 2, Wp - 2
    Cout = w_kkio.shape[-1]

    def tap_spec(kh):
        return pl.BlockSpec((1, 1, Wp, Cin),
                            lambda n, h, kh=kh: (n, h + kh, 0, 0))

    return pl.pallas_call(
        _conv3x3_bn_relu_kernel,
        out_shape=jax.ShapeDtypeStruct((N, H, W, Cout), x_padded.dtype),
        grid=(N, H),
        in_specs=[
            tap_spec(0), tap_spec(1), tap_spec(2),
            pl.BlockSpec((3, 3, Cin, Cout), lambda n, h: (0, 0, 0, 0)),
            pl.BlockSpec((1, Cout), lambda n, h: (0, 0)),
            pl.BlockSpec((1, Cout), lambda n, h: (0, 0)),
        ],
        out_specs=pl.BlockSpec((1, 1, W, Cout), lambda n, h: (n, h, 0, 0)),
        compiler_params=_cparams("parallel", "parallel"),
    )(x_padded, x_padded, x_padded, w_kkio, scale, shift)


# ----------------------------------------------------------------------------
# Kernel 3: fused 1x1 conv3 + folded bn3 (no relu) + global average pool +
#           SE gate MLP (conv4/relu/conv5/sigmoid).  Tiled over (N, HW tiles);
#           the pooled sums accumulate into a revisited output block along the
#           "arbitrary" HW-tile axis, and the tiny gate MLP runs on the final
#           tile of each image.
# ----------------------------------------------------------------------------
def _conv3_bn_se_kernel(x_ref, w3_ref, s3_ref, sh3_ref,
                        w4_ref, b4_ref, w5_ref, b5_ref,
                        h3_ref, gate_ref, *, inv_hw):
    j = pl.program_id(1)
    nj = pl.num_programs(1)

    y = jnp.dot(x_ref[0, :, :], w3_ref[...], preferred_element_type=jnp.float32)
    y = y * s3_ref[...] + sh3_ref[...]                     # (bm, C4), no relu
    h3_ref[...] = y[None, :, :].astype(h3_ref.dtype)

    part = jnp.sum(y, axis=0, keepdims=True)               # (1, C4) partial sum

    @pl.when(j == 0)
    def _init():
        gate_ref[...] = part[None, :, :]

    @pl.when(j > 0)
    def _acc():
        gate_ref[...] = gate_ref[...] + part[None, :, :]

    @pl.when(j == nj - 1)
    def _finalize():
        pooled = gate_ref[...][0] * inv_hw                 # (1, C4) = avg pool
        g = jnp.dot(pooled, w4_ref[...], preferred_element_type=jnp.float32)
        g = jnp.maximum(g + b4_ref[...], 0.0)
        g = jnp.dot(g, w5_ref[...], preferred_element_type=jnp.float32)
        g = g + b5_ref[...]
        gate_ref[...] = (1.0 / (1.0 + jnp.exp(-g)))[None, :, :]


def conv3_bn_se(h2, w3, s3, sh3, w4, b4, w5, b5, *, block_m=256):
    N, HW, Cp = h2.shape
    C4 = w3.shape[1]
    Cr = w4.shape[1]
    bm = _pick_block(HW, block_m)
    return pl.pallas_call(
        functools.partial(_conv3_bn_se_kernel, inv_hw=1.0 / float(HW)),
        out_shape=(jax.ShapeDtypeStruct((N, HW, C4), h2.dtype),
                   jax.ShapeDtypeStruct((N, 1, C4), jnp.float32)),
        grid=(N, HW // bm),
        in_specs=[
            pl.BlockSpec((1, bm, Cp), lambda n, j: (n, j, 0)),
            pl.BlockSpec((Cp, C4), lambda n, j: (0, 0)),
            pl.BlockSpec((1, C4), lambda n, j: (0, 0)),
            pl.BlockSpec((1, C4), lambda n, j: (0, 0)),
            pl.BlockSpec((C4, Cr), lambda n, j: (0, 0)),
            pl.BlockSpec((1, Cr), lambda n, j: (0, 0)),
            pl.BlockSpec((Cr, C4), lambda n, j: (0, 0)),
            pl.BlockSpec((1, C4), lambda n, j: (0, 0)),
        ],
        out_specs=(
            pl.BlockSpec((1, bm, C4), lambda n, j: (n, j, 0)),
            pl.BlockSpec((1, 1, C4), lambda n, j: (n, 0, 0)),
        ),
        compiler_params=_cparams("parallel", "arbitrary"),
    )(h2, w3, s3, sh3, w4, b4, w5, b5)


# ----------------------------------------------------------------------------
# Kernel 4: gate * out + residual, final ReLU (pure-bandwidth, tiled).
# ----------------------------------------------------------------------------
def _gate_residual_relu_kernel(h_ref, r_ref, g_ref, o_ref):
    h = h_ref[0, :, :].astype(jnp.float32)
    r = r_ref[0, :, :].astype(jnp.float32)
    g = g_ref[0, :, :]                                      # (1, C4) f32 gate
    y = jnp.maximum(h * g + r, 0.0)
    o_ref[...] = y[None, :, :].astype(o_ref.dtype)


def gate_residual_relu(h3, residual, gate, *, block_m=256):
    N, HW, C4 = h3.shape
    bm = _pick_block(HW, block_m)
    return pl.pallas_call(
        _gate_residual_relu_kernel,
        out_shape=jax.ShapeDtypeStruct((N, HW, C4), h3.dtype),
        grid=(N, HW // bm),
        in_specs=[
            pl.BlockSpec((1, bm, C4), lambda n, j: (n, j, 0)),
            pl.BlockSpec((1, bm, C4), lambda n, j: (n, j, 0)),
            pl.BlockSpec((1, 1, C4), lambda n, j: (n, 0, 0)),
        ],
        out_specs=pl.BlockSpec((1, bm, C4), lambda n, j: (n, j, 0)),
        compiler_params=_cparams("parallel", "parallel"),
    )(h3, residual, gate)


# ----------------------------------------------------------------------------
# Full Bottleneck forward (downsample=None, stride=1 identity-residual path)
# ----------------------------------------------------------------------------
def bottleneck_forward(x_nchw, params, stride=1, *, block_m=256):
    (w1, s1, sh1, w2, s2, sh2, w3, s3, sh3, w4, b4, w5, b5) = params
    # TODO(synk): `downsample` submodule is None in this config; only the
    # identity-residual path (stride=1, inplanes == 4*planes) is implemented.
    assert stride == 1

    x = jnp.transpose(x_nchw, (0, 2, 3, 1))                 # NCHW -> NHWC
    N, H, W, Cin = x.shape
    planes = w1.shape[0]
    C4 = w3.shape[0]
    assert Cin == C4, "identity residual requires inplanes == 4*planes"

    # conv1 (1x1) + bn1 + relu
    h = pointwise_conv_bn(x.reshape(N * H * W, Cin), w1.T, s1, sh1,
                          relu=True, block_m=block_m)
    h = h.reshape(N, H, W, planes)

    # conv2 (3x3, pad=1) + bn2 + relu (row-tiled, halo via 3 blocked row taps)
    hp = jnp.pad(h, ((0, 0), (1, 1), (1, 1), (0, 0)))
    w2_kkio = jnp.transpose(w2, (2, 3, 1, 0))               # OIHW -> (kh,kw,I,O)
    h = conv3x3_bn_relu(hp, w2_kkio, s2, sh2)

    # conv3 (1x1) + bn3, fused with global avg pool + SE gate MLP + sigmoid
    h3, gate = conv3_bn_se(h.reshape(N, H * W, planes), w3.T, s3, sh3,
                           w4.T, b4.reshape(1, -1), w5.T, b5.reshape(1, -1),
                           block_m=block_m)

    # gate * out + residual (identity), final relu
    y = gate_residual_relu(h3, x.reshape(N, H * W, C4), gate, block_m=block_m)
    return jnp.transpose(y.reshape(N, H, W, C4), (0, 3, 1, 2))   # NHWC -> NCHW


# ----------------------------------------------------------------------------
# Pure-JAX reference (same math) for a correctness check
# ----------------------------------------------------------------------------
def reference_forward(x_nchw, params):
    (w1, s1, sh1, w2, s2, sh2, w3, s3, sh3, w4, b4, w5, b5) = params
    x = jnp.transpose(x_nchw, (0, 2, 3, 1))
    N, H, W, Cin = x.shape
    planes, C4 = w1.shape[0], w3.shape[0]

    h = jnp.einsum('nhwc,cd->nhwd', x, w1.T) * s1[0] + sh1[0]
    h = jnp.maximum(h, 0.0)

    hp = jnp.pad(h, ((0, 0), (1, 1), (1, 1), (0, 0)))
    w2_kkio = jnp.transpose(w2, (2, 3, 1, 0))
    acc = jnp.zeros((N, H, W, planes), jnp.float32)
    for kh in range(3):
        for kw in range(3):
            acc = acc + jnp.einsum('nhwc,cd->nhwd',
                                   hp[:, kh:kh + H, kw:kw + W, :],
                                   w2_kkio[kh, kw])
    h = jnp.maximum(acc * s2[0] + sh2[0], 0.0)

    h = jnp.einsum('nhwc,cd->nhwd', h, w3.T) * s3[0] + sh3[0]

    pooled = h.mean(axis=(1, 2))
    g = jnp.maximum(pooled @ w4.T + b4, 0.0)
    g = jax.nn.sigmoid(g @ w5.T + b5)
    y = jnp.maximum(g[:, None, None, :] * h + x, 0.0)
    return jnp.transpose(y, (0, 3, 1, 2))


if __name__ == "__main__":
    key = jax.random.PRNGKey(0)
    N, H, W = 2, 16, 16
    planes = 8
    inplanes = planes * 4            # 32, so the identity residual add is valid
    C4 = planes * 4                  # 32
    Cr = C4 // 16                    # compress_rate = 16 -> 2

    keys = jax.random.split(key, 20)

    def nrm(k, shape, s=0.1):
        return jax.random.normal(k, shape, jnp.float32) * s

    # Conv weights in PyTorch shapes (OIHW squeezed for 1x1), deterministic.
    w1 = nrm(keys[0], (planes, inplanes))          # conv1: 1x1, no bias
    w2 = nrm(keys[1], (planes, planes, 3, 3))      # conv2: 3x3, no bias
    w3 = nrm(keys[2], (C4, planes))                # conv3: 1x1, no bias
    w4 = nrm(keys[3], (Cr, C4)); b4 = nrm(keys[4], (Cr,))   # conv4: 1x1 + bias
    w5 = nrm(keys[5], (C4, Cr)); b5 = nrm(keys[6], (C4,))   # conv5: 1x1 + bias

    # BatchNorm (eval mode) folded into per-channel scale/shift.
    def bn_fold(kg, kb, km, kv, C, eps=1e-5):
        gamma = 1.0 + nrm(kg, (C,))
        beta = nrm(kb, (C,))
        mean = nrm(km, (C,))
        var = jnp.abs(nrm(kv, (C,))) + 0.5
        scale = gamma / jnp.sqrt(var + eps)
        shift = beta - mean * scale
        return scale.reshape(1, C), shift.reshape(1, C)

    s1, sh1 = bn_fold(keys[7], keys[8], keys[9], keys[10], planes)
    s2, sh2 = bn_fold(keys[11], keys[12], keys[13], keys[14], planes)
    s3, sh3 = bn_fold(keys[15], keys[16], keys[17], keys[18], C4)

    params = (w1, s1, sh1, w2, s2, sh2, w3, s3, sh3, w4, b4, w5, b5)

    x = jax.random.normal(keys[19], (N, inplanes, H, W), jnp.float32)  # NCHW in

    # block_m=128 -> grids of (4,), (2,16), (2,2), (2,2): exercises pipelining,
    # megacore-parallel axes and the pooled-sum accumulate/finalize path.
    y = bottleneck_forward(x, params, stride=1, block_m=128)
    y = jax.block_until_ready(y)

    y_ref = jax.block_until_ready(reference_forward(x, params))
    assert y.shape == (N, C4, H, W)
    assert jnp.allclose(y, y_ref, atol=1e-4, rtol=1e-4), "mismatch vs reference"

    print("KERNEL_OK")
</pallas_src>

<mosaic_0001>
module attributes {stable_mosaic.version = 11 : i64} {
  func.func @_pw_conv_bn_kernel(%arg0: i32, %arg1: memref<128x32xf32, #tpu.memory_space<vmem>>, %arg2: memref<32x8xf32, #tpu.memory_space<vmem>>, %arg3: memref<1x8xf32, #tpu.memory_space<vmem>>, %arg4: memref<1x8xf32, #tpu.memory_space<vmem>>, %arg5: memref<128x8xf32, #tpu.memory_space<vmem>>) attributes {dimension_semantics = [#tpu.dimension_semantics<parallel>], iteration_bounds = array<i64: 4>, scalar_prefetch = 0 : i64, scratch_operands = 0 : i64, tpu.core_type = #tpu.core_type<tc>, window_params = [{transform_indices = @transform_0, window_bounds = array<i64: 128, 32>}, {pipeline_mode = #tpu.pipeline_mode<synchronous>, transform_indices = @transform_1, window_bounds = array<i64: 32, 8>}, {pipeline_mode = #tpu.pipeline_mode<synchronous>, transform_indices = @transform_2, window_bounds = array<i64: 1, 8>}, {pipeline_mode = #tpu.pipeline_mode<synchronous>, transform_indices = @transform_3, window_bounds = array<i64: 1, 8>}, {transform_indices = @transform_4, window_bounds = array<i64: 128, 8>}]} {
    %c0 = arith.constant 0 : index
    %c0_0 = arith.constant 0 : index
    %0 = vector.load %arg1[%c0, %c0_0] : memref<128x32xf32, #tpu.memory_space<vmem>>, vector<128x32xf32>
    %c0_1 = arith.constant 0 : index
    %c0_2 = arith.constant 0 : index
    %1 = vector.load %arg2[%c0_1, %c0_2] : memref<32x8xf32, #tpu.memory_space<vmem>>, vector<32x8xf32>
    %cst = arith.constant dense<0.000000e+00> : vector<128x8xf32>
    %2 = tpu.matmul %0, %1, %cst {dimension_numbers = #tpu.dot_dimension_numbers<[1], [0], [0], [1], [0, 0, 1, 1], [], []>} : vector<128x32xf32>, vector<32x8xf32>, vector<128x8xf32> -> vector<128x8xf32>
    %c0_3 = arith.constant 0 : index
    %c0_4 = arith.constant 0 : index
    %3 = vector.load %arg3[%c0_3, %c0_4] : memref<1x8xf32, #tpu.memory_space<vmem>>, vector<1x8xf32>
    %4 = vector.broadcast %3 : vector<1x8xf32> to vector<128x8xf32>
    %5 = arith.mulf %2, %4 : vector<128x8xf32>
    %c0_5 = arith.constant 0 : index
    %c0_6 = arith.constant 0 : index
    %6 = vector.load %arg4[%c0_5, %c0_6] : memref<1x8xf32, #tpu.memory_space<vmem>>, vector<1x8xf32>
    %7 = vector.broadcast %6 : vector<1x8xf32> to vector<128x8xf32>
    %8 = arith.addf %5, %7 : vector<128x8xf32>
    %cst_7 = arith.constant 0.000000e+00 : f32
    %9 = vector.broadcast %cst_7 : f32 to vector<128x8xf32>
    %10 = arith.maximumf %8, %9 : vector<128x8xf32>
    %c0_8 = arith.constant 0 : index
    %c0_9 = arith.constant 0 : index
    %11 = vector.load %arg5[%c0_8, %c0_9] : memref<128x8xf32, #tpu.memory_space<vmem>>, vector<128x8xf32>
    tpu.vector_store %arg5[%c0_8, %c0_9], %10 {strides = array<i32>} : memref<128x8xf32, #tpu.memory_space<vmem>>, vector<128x8xf32>,
    return
  }
  func.func @transform_0(%arg0: i32) -> (i32, i32) {
    %c0_i32 = arith.constant 0 : i32
    %c0_i32_0 = arith.constant 0 : i32
    return %arg0, %c0_i32 : i32, i32
  }
  func.func @transform_1(%arg0: i32) -> (i32, i32) {
    %c0_i32 = arith.constant 0 : i32
    %c0_i32_0 = arith.constant 0 : i32
    %c0_i32_1 = arith.constant 0 : i32
    return %c0_i32, %c0_i32_0 : i32, i32
  }
  func.func @transform_2(%arg0: i32) -> (i32, i32) {
    %c0_i32 = arith.constant 0 : i32
    %c0_i32_0 = arith.constant 0 : i32
    %c0_i32_1 = arith.constant 0 : i32
    return %c0_i32, %c0_i32_0 : i32, i32
  }
  func.func @transform_3(%arg0: i32) -> (i32, i32) {
    %c0_i32 = arith.constant 0 : i32
    %c0_i32_0 = arith.constant 0 : i32
    %c0_i32_1 = arith.constant 0 : i32
    return %c0_i32, %c0_i32_0 : i32, i32
  }
  func.func @transform_4(%arg0: i32) -> (i32, i32) {
    %c0_i32 = arith.constant 0 : i32
    %c0_i32_0 = arith.constant 0 : i32
    return %arg0, %c0_i32 : i32, i32
  }
}

</mosaic_0001>

<llo_original>
// kernel: tpu_custom_call.1
$region0: #{tpu_custom_call.1}
  #allocation0 [shape = 'u32[]', space=smem, size = 0x4, offset = 0x4, fixed_abs, tag = 'smem constant byte address 0x4 - core index']
  #allocation1 [shape = 'u32[144,128]{1,0:T(1,128)}', space=vmem, size = 0x12000, scoped, tag = 'internal scratch']
  %s0 = inlined_call_operand.vmem [shape: f32[512,32], index: 0, kind: input, shape index: {}]
  %s1 = inlined_call_operand.vmem [shape: f32[32,8], index: 1, kind: input, shape index: {}]
  %s2 = inlined_call_operand.vmem [shape: f32[1,8], index: 2, kind: input, shape index: {}]
  %s3 = inlined_call_operand.vmem [shape: f32[1,8], index: 3, kind: input, shape index: {}]
  %s4 = inlined_call_operand.vmem [shape: f32[512,8], index: 4, kind: output, shape index: {}]
  %s5 = sld [smem:[#allocation0]]
  $region49: #{tpu_custom_call.1} parent=0
    _
  %s7 = ssub.s32 1, %s5
  %s8 = scalar_select 0, %s7, %s5
  loop: start=0, step=1, limit=6
  $region2: #{tpu_custom_call.1} parent=0 // loop_pre_header
    _
  $region3: #{tpu_custom_call.1} parent=0 // loop_header
    %s10 = sphi 0, %s14
    %p11 = scmp.ge.s32.totalorder %s10, 6
    %s20 = sphi 0, %s22
    %s23 = sphi 0, %s20
    %s24 = sphi 0, %s23
    %s40 = sphi 0, %s24
    %s44 = sphi 0, %s44
    %s46 = sphi 0, %s44
    %s47 = sphi 0, %s46
    %s61 = sphi 0, %s47
    %s65 = sphi 0, %s65
    %s67 = sphi 0, %s65
    %s68 = sphi 0, %s67
    %s82 = sphi 0, %s68
    %s86 = sphi 0, %s86
    %s88 = sphi 0, %s86
    %s89 = sphi 0, %s88
    %s103 = sphi 0, %s89
    %s109 = sphi 0, %s111
    %s112 = sphi 0, %s109
    %s113 = sphi 0, %s112
    %s129 = sphi 0, %s113
  $region4: #{tpu_custom_call.1} parent=0 // loop_header_branch
    %13 = sbr.rel (%p11) target = $region8
  $region5: #{tpu_custom_call.1} parent=0 // loop_body
    %s15 = ssub.s32 %s10, 1
    %s16 = ssub.s32 %s10, 2
    %s17 = sadd.s32 %s10, 1
    %s18 = ssub.s32 %s10, %s17
    %p19 = scmp.eq.s32.totalorder %s18, 0
    %s21 = sadd.s32 %s20, 1
    %s22 = scalar_select %p19, %s20, %s21
    %p25 = pneg %p19
    %p26 = scmp.eq.s32.totalorder %s10, 3
    %p27 = por %p25, %p26
    %p28 = scmp.ne.s32.totalorder %s20, %s23
    %p29 = scmp.eq.s32.totalorder %s10, 0
    %p30 = por %p28, %p29
    %p31 = scmp.ne.s32.totalorder %s20, %s23
    %p32 = scmp.eq.s32.totalorder %s15, 3
    %p33 = por %p31, %p32
    %p34 = scmp.ne.s32.totalorder %s23, %s24
    %p35 = scmp.eq.s32.totalorder %s15, 0
    %p36 = por %p34, %p35
    %p37 = scmp.ne.s32.totalorder %s23, %s24
    %p38 = scmp.eq.s32.totalorder %s16, 3
    %p39 = por %p37, %p38
    %p41 = scmp.ne.s32.totalorder %s24, %s40
    %p42 = scmp.eq.s32.totalorder %s16, 0
    %p43 = por %p41, %p42
    %s45 = sadd.s32 %s44, 1
    %p48 = scmp.eq.s32.totalorder %s10, 3
    %p49 = scmp.ne.s32.totalorder %s44, %s46
    %p50 = scmp.eq.s32.totalorder %s10, 0
    %p51 = por %p49, %p50
    %p52 = scmp.ne.s32.totalorder %s44, %s46
    %p53 = scmp.eq.s32.totalorder %s15, 3
    %p54 = por %p52, %p53
    %p55 = scmp.ne.s32.totalorder %s46, %s47
    %p56 = scmp.eq.s32.totalorder %s15, 0
    %p57 = por %p55, %p56
    %p58 = scmp.ne.s32.totalorder %s46, %s47
    %p59 = scmp.eq.s32.totalorder %s16, 3
    %p60 = por %p58, %p59
    %p62 = scmp.ne.s32.totalorder %s47, %s61
    %p63 = scmp.eq.s32.totalorder %s16, 0
    %p64 = por %p62, %p63
    %s66 = sadd.s32 %s65, 1
    %p69 = scmp.eq.s32.totalorder %s10, 3
    %p70 = scmp.ne.s32.totalorder %s65, %s67
    %p71 = scmp.eq.s32.totalorder %s10, 0
    %p72 = por %p70, %p71
    %p73 = scmp.ne.s32.totalorder %s65, %s67
    %p74 = scmp.eq.s32.totalorder %s15, 3
    %p75 = por %p73, %p74
    %p76 = scmp.ne.s32.totalorder %s67, %s68
    %p77 = scmp.eq.s32.totalorder %s15, 0
    %p78 = por %p76, %p77
    %p79 = scmp.ne.s32.totalorder %s67, %s68
    %p80 = scmp.eq.s32.totalorder %s16, 3
    %p81 = por %p79, %p80
    %p83 = scmp.ne.s32.totalorder %s68, %s82
    %p84 = scmp.eq.s32.totalorder %s16, 0
    %p85 = por %p83, %p84
    %s87 = sadd.s32 %s86, 1
    %p90 = scmp.eq.s32.totalorder %s10, 3
    %p91 = scmp.ne.s32.totalorder %s86, %s88
    %p92 = scmp.eq.s32.totalorder %s10, 0
    %p93 = por %p91, %p92
    %p94 = scmp.ne.s32.totalorder %s86, %s88
    %p95 = scmp.eq.s32.totalorder %s15, 3
    %p96 = por %p94, %p95
    %p97 = scmp.ne.s32.totalorder %s88, %s89
    %p98 = scmp.eq.s32.totalorder %s15, 0
    %p99 = por %p97, %p98
    %p100 = scmp.ne.s32.totalorder %s88, %s89
    %p101 = scmp.eq.s32.totalorder %s16, 3
    %p102 = por %p100, %p101
    %p104 = scmp.ne.s32.totalorder %s89, %s103
    %p105 = scmp.eq.s32.totalorder %s16, 0
    %p106 = por %p104, %p105
    %s107 = ssub.s32 %s10, %s17
    %p108 = scmp.eq.s32.totalorder %s107, 0
    %s110 = sadd.s32 %s109, 1
    %s111 = scalar_select %p108, %s109, %s110
    %p114 = pneg %p108
    %p115 = scmp.eq.s32.totalorder %s10, 3
    %p116 = por %p114, %p115
    %p117 = scmp.ne.s32.totalorder %s109, %s112
    %p118 = scmp.eq.s32.totalorder %s10, 0
    %p119 = por %p117, %p118
    %p120 = scmp.ne.s32.totalorder %s109, %s112
    %p121 = scmp.eq.s32.totalorder %s15, 3
    %p122 = por %p120, %p121
    %p123 = scmp.ne.s32.totalorder %s112, %s113
    %p124 = scmp.eq.s32.totalorder %s15, 0
    %p125 = por %p123, %p124
    %p126 = scmp.ne.s32.totalorder %s112, %s113
    %p127 = scmp.eq.s32.totalorder %s16, 3
    %p128 = por %p126, %p127
    %p130 = scmp.ne.s32.totalorder %s113, %s129
    %p131 = scmp.eq.s32.totalorder %s16, 0
    %p132 = por %p130, %p131
    %p133 = scmp.le.s32.totalorder 1, %s10
    %p134 = scmp.lt.s32.totalorder %s10, 5
    %p135 = pnand %p133, %p134
    %p136 = pneg %p135
    // Predicated region
    $region9: #{tpu_custom_call.1} parent=5 // pred_check
      _
    $region10: #{tpu_custom_call.1} parent=5 // pred_check_branch
      %138 = sbr.rel (%p135) target = $region12
    $region11: #{tpu_custom_call.1} parent=5 // pred_region
      %s139 = ssub.s32 %s10, 1
      // Predicated region
      $region13: #{tpu_custom_call.1} parent=11 // pred_check
        %p140 = pneg %p57
      $region14: #{tpu_custom_call.1} parent=11 // pred_check_branch
        %142 = sbr.rel (%p140) target = $region16
      $region15: #{tpu_custom_call.1} parent=11 // pred_region
        _
      $region16: #{tpu_custom_call.1} parent=11 // pred_fallthru
        _
      // Predicated region
      $region17: #{tpu_custom_call.1} parent=11 // pred_check
        %p143 = pneg %p78
      $region18: #{tpu_custom_call.1} parent=11 // pred_check_branch
        %145 = sbr.rel (%p143) target = $region20
      $region19: #{tpu_custom_call.1} parent=11 // pred_region
        _
      $region20: #{tpu_custom_call.1} parent=11 // pred_fallthru
        _
      // Predicated region
      $region21: #{tpu_custom_call.1} parent=11 // pred_check
        %p146 = pneg %p99
      $region22: #{tpu_custom_call.1} parent=11 // pred_check_branch
        %148 = sbr.rel (%p146) target = $region24
      $region23: #{tpu_custom_call.1} parent=11 // pred_region
        _
      $region24: #{tpu_custom_call.1} parent=11 // pred_fallthru
        _
    $region12: #{tpu_custom_call.1} parent=5 // pred_fallthru
      _
    %p149 = scmp.lt.s32.totalorder %s10, 4
    // Predicated region
    $region25: #{tpu_custom_call.1} parent=5 // pred_check
      %p150 = pneg %p149
    $region26: #{tpu_custom_call.1} parent=5 // pred_check_branch
      %152 = sbr.rel (%p150) target = $region28
    $region27: #{tpu_custom_call.1} parent=5 // pred_region
      // Predicated region
      $region29: #{tpu_custom_call.1} parent=27 // pred_check
        %p153 = pneg %p30
      $region30: #{tpu_custom_call.1} parent=27 // pred_check_branch
        %155 = sbr.rel (%p153) target = $region32
      $region31: #{tpu_custom_call.1} parent=27 // pred_region
        %s156 = smul.u32 16, %s10
        %p157 = scmp.lt.s32.totalorder %s156, 63
        %s158 = scalar_select %p157, %s156, 63
        %s159 = smul.addr %s158, 8
        %s160 = scalar_lea.vmem %s0, %s159
        %s161 = smul.u32 16, %s10
      $region32: #{tpu_custom_call.1} parent=27 // pred_fallthru
        _
    $region28: #{tpu_custom_call.1} parent=5 // pred_fallthru
      _
    %p162 = scmp.le.s32.totalorder 1, %s10
    %p163 = scmp.lt.s32.totalorder %s10, 5
    %p164 = pnand %p162, %p163
    %p165 = pneg %p164
    // Predicated region
    $region33: #{tpu_custom_call.1} parent=5 // pred_check
      _
    $region34: #{tpu_custom_call.1} parent=5 // pred_check_branch
      %167 = sbr.rel (%p164) target = $region36
    $region35: #{tpu_custom_call.1} parent=5 // pred_region
      %s168 = ssub.s32 %s10, 1
      %s169 = smul.u32 16, %s15
      %p170 = scmp.lt.s32.totalorder %s169, 63
      %s171 = scalar_select %p170, %s169, 63
      %s172 = smul.addr %s171, 8
      %s173 = scalar_lea.vmem %s0, %s172
      %p174 = pneg %p36
      %p175 = pneg %p33
      %p176 = pneg %p57
      %p177 = pneg %p54
      %p178 = pneg %p78
      %p179 = pneg %p75
      %p180 = pneg %p99
      %p181 = pneg %p96
      %p182 = pneg %p125
      %p183 = pneg %p122
      %s184 = smul.u32 16, %s15
      %p185 = scmp.lt.s32.totalorder %s184, 63
      %s186 = scalar_select %p185, %s184, 63
      %s187 = smul.addr %s186, 8
      %s188 = scalar_lea.vmem %s4, %s187
      %s189 = smul.u32 16, %s15
      %p190 = scmp.lt.s32.totalorder %s189, 63
      %s191 = scalar_select %p190, %s189, 63
      %s192 = smul.addr %s191, 8
      %s193 = scalar_lea.vmem %s0, %s192
      %s194 = smul.u32 16, %s15
      %s195 = smul.u32 16, %s15
      %p196 = scmp.lt.s32.totalorder %s195, 63
      %s197 = scalar_select %p196, %s195, 63
      %s198 = smul.addr %s197, 8
      %s199 = scalar_lea.vmem %s4, %s198
      %s200 = smul.u32 16, %s15
      %v201 = vld [vmem:[%s193] sm:$0xff]
      %v202 = vld [vmem:[%s193 + $0x8] sm:$0xff]
      %v203 = vld [vmem:[%s193 + $0x10] sm:$0xff]
      %v204 = vld [vmem:[%s193 + $0x18] sm:$0xff]
      %v205 = vld [vmem:[%s193 + $0x20] sm:$0xff]
      %v206 = vld [vmem:[%s193 + $0x28] sm:$0xff]
      %v207 = vld [vmem:[%s193 + $0x30] sm:$0xff]
      %v208 = vld [vmem:[%s193 + $0x38] sm:$0xff]
      %v209 = vld [vmem:[%s193 + $0x40] sm:$0xff]
      %v210 = vld [vmem:[%s193 + $0x48] sm:$0xff]
      %v211 = vld [vmem:[%s193 + $0x50] sm:$0xff]
      %v212 = vld [vmem:[%s193 + $0x58] sm:$0xff]
      %v213 = vld [vmem:[%s193 + $0x60] sm:$0xff]
      %v214 = vld [vmem:[%s193 + $0x68] sm:$0xff]
      %v215 = vld [vmem:[%s193 + $0x70] sm:$0xff]
      %v216 = vld [vmem:[%s193 + $0x78] sm:$0xff]
      %v217 = vld [vmem:[%s1] sm:$0xff]
      %v218 = vld [vmem:[%s1 + $0x8] sm:$0xff]
      %v219 = vld [vmem:[%s1 + $0x10] sm:$0xff]
      %v220 = vld [vmem:[%s1 + $0x18] sm:$0xff]
      %vm221 = vcmask 261120
      %v223 = vsel %vm221, %v201, 0
      %v226 = vsel %vm221, %v202, 0
      %v229 = vsel %vm221, %v203, 0
      %v232 = vsel %vm221, %v204, 0
      %v235 = vsel %vm221, %v205, 0
      %v238 = vsel %vm221, %v206, 0
      %v241 = vsel %vm221, %v207, 0
      %v244 = vsel %vm221, %v208, 0
      %v247 = vsel %vm221, %v209, 0
      %v250 = vsel %vm221, %v210, 0
      %v253 = vsel %vm221, %v211, 0
      %v256 = vsel %vm221, %v212, 0
      %v259 = vsel %vm221, %v213, 0
      %v262 = vsel %vm221, %v214, 0
      %v265 = vsel %vm221, %v215, 0
      %v268 = vsel %vm221, %v216, 0
      %270 = vmatprep.subr.mxu0 0.0
      %271 = vmatpush1.msra.mxu0 %v217
      %272 = vmatprep.subr.mxu0 0.0
      %273 = vmatpush1.msra.mxu0 %v218
      %274 = vmatprep.subr.mxu0 0.0
      %275 = vmatpush1.msra.mxu0 %v219
      %276 = vmatprep.subr.mxu0 0.0
      %277 = vmatpush1.msra.mxu0 %v220
      %278 = vmatprep.subr.mxu0 0.0
      %279 = vmatpush1.msra.mxu0 0.0
      %280 = vmatprep.subr.mxu0 0.0
      %281 = vmatpush1.msra.mxu0 0.0
      %282 = vmatprep.subr.mxu0 0.0
      %283 = vmatpush1.msra.mxu0 0.0
      %284 = vmatprep.subr.mxu0 0.0
      %285 = vmatpush1.msra.mxu0 0.0
      %286 = vmatprep.subr.mxu0 0.0
      %287 = vmatpush1.msra.mxu0 0.0
      %288 = vmatprep.subr.mxu0 0.0
      %289 = vmatpush1.msra.mxu0 0.0
      %290 = vmatprep.subr.mxu0 0.0
      %291 = vmatpush1.msra.mxu0 0.0
      %292 = vmatprep.subr.mxu0 0.0
      %293 = vmatpush1.msra.mxu0 0.0
      %294 = vmatprep.subr.mxu0 0.0
      %295 = vmatpush1.msra.mxu0 0.0
      %296 = vmatprep.subr.mxu0 0.0
      %297 = vmatpush1.msra.mxu0 0.0
      %298 = vmatprep.subr.mxu0 0.0
      %299 = vmatpush1.msra.mxu0 0.0
      %300 = vmatprep.subr.mxu0 0.0
      %301 = vmatpush1.msra.mxu0 0.0
      %302 = vmatprep.subr.mxu0 0.0
      %303 = vmatpush1.msra.mxu0 0.0
      %304 = vmatprep.subr.mxu0 0.0
      %305 = vmatpush1.msra.mxu0 0.0
      %306 = vmatprep.subr.mxu0 0.0
      %307 = vmatpush1.msra.mxu0 0.0
      %308 = vmatprep.subr.mxu0 0.0
      %309 = vmatpush1.msra.mxu0 0.0
      %310 = vmatprep.subr.mxu0 0.0
      %311 = vmatpush1.msra.mxu0 0.0
      %312 = vmatprep.subr.mxu0 0.0
      %313 = vmatpush1.msra.mxu0 0.0
      %314 = vmatprep.subr.mxu0 0.0
      %315 = vmatpush1.msra.mxu0 0.0
      %316 = vmatprep.subr.mxu0 0.0
      %317 = vmatpush1.msra.mxu0 0.0
      %318 = vmatprep.subr.mxu0 0.0
      %319 = vmatpush1.msra.mxu0 0.0
      %320 = vmatprep.subr.mxu0 0.0
      %321 = vmatpush1.msra.mxu0 0.0
      %322 = vmatprep.subr.mxu0 0.0
      %323 = vmatpush1.msra.mxu0 0.0
      %324 = vmatprep.subr.mxu0 0.0
      %325 = vmatpush1.msra.mxu0 0.0
      %326 = vmatprep.subr.mxu0 0.0
      %327 = vmatpush1.msra.mxu0 0.0
      %328 = vmatprep.subr.mxu0 0.0
      %329 = vmatpush1.msra.mxu0 0.0
      %330 = vmatprep.subr.mxu0 0.0
      %331 = vmatpush1.msra.mxu0 0.0
      %332 = vmatprep.subr.mxu0 0.0
      %333 = vmatpush1.msra.mxu0 0.0
      %334 = vmatprep.mubr.f32.mxu0 0.0
      %335 = vmatmul.mubr.f32.gmra.mrb[0].mxu0 %v223
      %v336 = vpop.f32.mrb[0].mxu0
      %v337 = vadd.f32 0.0, %v336
      %v338 = vpop.f32.mrb[0].mxu0
      %339 = vmatprep.mubr.f32.mxu0 0.0
      %340 = vmatmul.mubr.f32.gmra.mrb[0].mxu0 %v226
      %v341 = vpop.f32.mrb[0].mxu0
      %v342 = vadd.f32 0.0, %v341
      %v343 = vpop.f32.mrb[0].mxu0
      %344 = vmatprep.mubr.f32.mxu0 0.0
      %345 = vmatmul.mubr.f32.gmra.mrb[0].mxu0 %v229
      %v346 = vpop.f32.mrb[0].mxu0
      %v347 = vadd.f32 0.0, %v346
      %v348 = vpop.f32.mrb[0].mxu0
      %349 = vmatprep.mubr.f32.mxu0 0.0
      %350 = vmatmul.mubr.f32.gmra.mrb[0].mxu0 %v232
      %v351 = vpop.f32.mrb[0].mxu0
      %v352 = vadd.f32 0.0, %v351
      %v353 = vpop.f32.mrb[0].mxu0
      %354 = vmatprep.mubr.f32.mxu0 0.0
      %355 = vmatmul.mubr.f32.gmra.mrb[0].mxu0 %v235
      %v356 = vpop.f32.mrb[0].mxu0
      %v357 = vadd.f32 0.0, %v356
      %v358 = vpop.f32.mrb[0].mxu0
      %359 = vmatprep.mubr.f32.mxu0 0.0
      %360 = vmatmul.mubr.f32.gmra.mrb[0].mxu0 %v238
      %v361 = vpop.f32.mrb[0].mxu0
      %v362 = vadd.f32 0.0, %v361
      %v363 = vpop.f32.mrb[0].mxu0
      %364 = vmatprep.mubr.f32.mxu0 0.0
      %365 = vmatmul.mubr.f32.gmra.mrb[0].mxu0 %v241
      %v366 = vpop.f32.mrb[0].mxu0
      %v367 = vadd.f32 0.0, %v366
      %v368 = vpop.f32.mrb[0].mxu0
      %369 = vmatprep.mubr.f32.mxu0 0.0
      %370 = vmatmul.mubr.f32.gmra.mrb[0].mxu0 %v244
      %v371 = vpop.f32.mrb[0].mxu0
      %v372 = vadd.f32 0.0, %v371
      %v373 = vpop.f32.mrb[0].mxu0
      %374 = vmatprep.mubr.f32.mxu0 0.0
      %375 = vmatmul.mubr.f32.gmra.mrb[0].mxu0 %v247
      %v376 = vpop.f32.mrb[0].mxu0
      %v377 = vadd.f32 0.0, %v376
      %v378 = vpop.f32.mrb[0].mxu0
      %379 = vmatprep.mubr.f32.mxu0 0.0
      %380 = vmatmul.mubr.f32.gmra.mrb[0].mxu0 %v250
      %v381 = vpop.f32.mrb[0].mxu0
      %v382 = vadd.f32 0.0, %v381
      %v383 = vpop.f32.mrb[0].mxu0
      %384 = vmatprep.mubr.f32.mxu0 0.0
      %385 = vmatmul.mubr.f32.gmra.mrb[0].mxu0 %v253
      %v386 = vpop.f32.mrb[0].mxu0
      %v387 = vadd.f32 0.0, %v386
      %v388 = vpop.f32.mrb[0].mxu0
      %389 = vmatprep.mubr.f32.mxu0 0.0
      %390 = vmatmul.mubr.f32.gmra.mrb[0].mxu0 %v256
      %v391 = vpop.f32.mrb[0].mxu0
      %v392 = vadd.f32 0.0, %v391
      %v393 = vpop.f32.mrb[0].mxu0
      %394 = vmatprep.mubr.f32.mxu0 0.0
      %395 = vmatmul.mubr.f32.gmra.mrb[0].mxu0 %v259
      %v396 = vpop.f32.mrb[0].mxu0
      %v397 = vadd.f32 0.0, %v396
      %v398 = vpop.f32.mrb[0].mxu0
      %399 = vmatprep.mubr.f32.mxu0 0.0
      %400 = vmatmul.mubr.f32.gmra.mrb[0].mxu0 %v262
      %v401 = vpop.f32.mrb[0].mxu0
      %v402 = vadd.f32 0.0, %v401
      %v403 = vpop.f32.mrb[0].mxu0
      %404 = vmatprep.mubr.f32.mxu0 0.0
      %405 = vmatmul.mubr.f32.gmra.mrb[0].mxu0 %v265
      %v406 = vpop.f32.mrb[0].mxu0
      %v407 = vadd.f32 0.0, %v406
      %v408 = vpop.f32.mrb[0].mxu0
      %409 = vmatprep.mubr.f32.mxu0 0.0
      %410 = vmatmul.mubr.f32.gmra.mrb[0].mxu0 %v268
      %v411 = vpop.f32.mrb[0].mxu0
      %v412 = vadd.f32 0.0, %v411
      %v413 = vpop.f32.mrb[0].mxu0
      %414 = vdwg.mxu0
      %v415 = vld [vmem:[%s2] sm:$0x1]
      %v417 = vlaneseq
      %v418 = vshrl.u32 %v417, 7
      %v419 = vsub.s32 0, %v418
      %v420 = vrot.slane %v415, %v419
      %v422 = vmul.f32 %v337, %v420
      %v423 = vmul.f32 %v342, %v420
      %v424 = vmul.f32 %v347, %v420
      %v425 = vmul.f32 %v352, %v420
      %v426 = vmul.f32 %v357, %v420
      %v427 = vmul.f32 %v362, %v420
      %v428 = vmul.f32 %v367, %v420
      %v429 = vmul.f32 %v372, %v420
      %v430 = vmul.f32 %v377, %v420
      %v431 = vmul.f32 %v382, %v420
      %v432 = vmul.f32 %v387, %v420
      %v433 = vmul.f32 %v392, %v420
      %v434 = vmul.f32 %v397, %v420
      %v435 = vmul.f32 %v402, %v420
      %v436 = vmul.f32 %v407, %v420
      %v437 = vmul.f32 %v412, %v420
      %v438 = vld [vmem:[%s3] sm:$0x1]
      %v440 = vlaneseq
      %v441 = vshrl.u32 %v440, 7
      %v442 = vsub.s32 0, %v441
      %v443 = vrot.slane %v438, %v442
      %v445 = vadd.f32 %v422, %v443
      %v446 = vadd.f32 %v423, %v443
      %v447 = vadd.f32 %v424, %v443
      %v448 = vadd.f32 %v425, %v443
      %v449 = vadd.f32 %v426, %v443
      %v450 = vadd.f32 %v427, %v443
      %v451 = vadd.f32 %v428, %v443
      %v452 = vadd.f32 %v429, %v443
      %v453 = vadd.f32 %v430, %v443
      %v454 = vadd.f32 %v431, %v443
      %v455 = vadd.f32 %v432, %v443
      %v456 = vadd.f32 %v433, %v443
      %v457 = vadd.f32 %v434, %v443
      %v458 = vadd.f32 %v435, %v443
      %v459 = vadd.f32 %v436, %v443
      %v460 = vadd.f32 %v437, %v443
      %v461 = vmax.f32 %v445, 0.0
      %v462 = vmax.f32 %v446, 0.0
      %v463 = vmax.f32 %v447, 0.0
      %v464 = vmax.f32 %v448, 0.0
      %v465 = vmax.f32 %v449, 0.0
      %v466 = vmax.f32 %v450, 0.0
      %v467 = vmax.f32 %v451, 0.0
      %v468 = vmax.f32 %v452, 0.0
      %v469 = vmax.f32 %v453, 0.0
      %v470 = vmax.f32 %v454, 0.0
      %v471 = vmax.f32 %v455, 0.0
      %v472 = vmax.f32 %v456, 0.0
      %v473 = vmax.f32 %v457, 0.0
      %v474 = vmax.f32 %v458, 0.0
      %v475 = vmax.f32 %v459, 0.0
      %v476 = vmax.f32 %v460, 0.0
      %vm477 = vcmask 64512
      %478 = vst.msk [vmem:[%s199] sm:$0xff] %vm477, %v461
      %479 = vst.msk [vmem:[%s199 + $0x8] sm:$0xff] %vm477, %v462
      %480 = vst.msk [vmem:[%s199 + $0x10] sm:$0xff] %vm477, %v463
      %481 = vst.msk [vmem:[%s199 + $0x18] sm:$0xff] %vm477, %v464
      %482 = vst.msk [vmem:[%s199 + $0x20] sm:$0xff] %vm477, %v465
      %483 = vst.msk [vmem:[%s199 + $0x28] sm:$0xff] %vm477, %v466
      %484 = vst.msk [vmem:[%s199 + $0x30] sm:$0xff] %vm477, %v467
      %485 = vst.msk [vmem:[%s199 + $0x38] sm:$0xff] %vm477, %v468
      %486 = vst.msk [vmem:[%s199 + $0x40] sm:$0xff] %vm477, %v469
      %487 = vst.msk [vmem:[%s199 + $0x48] sm:$0xff] %vm477, %v470
      %488 = vst.msk [vmem:[%s199 + $0x50] sm:$0xff] %vm477, %v471
      %489 = vst.msk [vmem:[%s199 + $0x58] sm:$0xff] %vm477, %v472
      %490 = vst.msk [vmem:[%s199 + $0x60] sm:$0xff] %vm477, %v473
      %491 = vst.msk [vmem:[%s199 + $0x68] sm:$0xff] %vm477, %v474
      %492 = vst.msk [vmem:[%s199 + $0x70] sm:$0xff] %vm477, %v475
      %493 = vst.msk [vmem:[%s199 + $0x78] sm:$0xff] %vm477, %v476
      %s494 = smul.u32 16, %s15
      %p495 = scmp.lt.s32.totalorder %s494, 63
      %s496 = scalar_select %p495, %s494, 63
      %s497 = smul.addr %s496, 8
      %s498 = scalar_lea.vmem %s4, %s497
      // Predicated region
      $region37: #{tpu_custom_call.1} parent=35 // pred_check
        %p499 = pneg %p122
      $region38: #{tpu_custom_call.1} parent=35 // pred_check_branch
        %501 = sbr.rel (%p499) target = $region40
      $region39: #{tpu_custom_call.1} parent=35 // pred_region
        %s502 = smul.u32 16, %s15
      $region40: #{tpu_custom_call.1} parent=35 // pred_fallthru
        _
    $region36: #{tpu_custom_call.1} parent=5 // pred_fallthru
      _
    %p503 = scmp.le.s32.totalorder 2, %s10
    // Predicated region
    $region41: #{tpu_custom_call.1} parent=5 // pred_check
      %p504 = pneg %p503
    $region42: #{tpu_custom_call.1} parent=5 // pred_check_branch
      %506 = sbr.rel (%p504) target = $region44
    $region43: #{tpu_custom_call.1} parent=5 // pred_region
      %s507 = ssub.s32 %s10, 2
      // Predicated region
      $region45: #{tpu_custom_call.1} parent=43 // pred_check
        %p508 = pneg %p128
      $region46: #{tpu_custom_call.1} parent=43 // pred_check_branch
        %510 = sbr.rel (%p508) target = $region48
      $region47: #{tpu_custom_call.1} parent=43 // pred_region
        %s511 = smul.u32 16, %s16
        %p512 = scmp.lt.s32.totalorder %s511, 63
        %s513 = scalar_select %p512, %s511, 63
        %s514 = smul.addr %s513, 8
        %s515 = scalar_lea.vmem %s4, %s514
      $region48: #{tpu_custom_call.1} parent=43 // pred_fallthru
        _
    $region44: #{tpu_custom_call.1} parent=5 // pred_fallthru
      _
  $region6: #{tpu_custom_call.1} parent=0 // loop_footer
    %s14 = sadd.s32 1, %s10
  $region7: #{tpu_custom_call.1} parent=0 // loop_footer_branch
    %9 = sbr.rel target = $region3
  $region8: #{tpu_custom_call.1} parent=0 // loop_exit
    _

</llo_original>
